<compile_context>
chip_gen: v7x
topology: tpu7x:2x2x1
jax: 0.10.0
libtpu: 0.0.40
codegen_flags: <defaults>
</compile_context>

<pallas_src>
import functools

import jax
import jax.numpy as jnp
from jax.experimental import pallas as pl
from jax.experimental.pallas import tpu as pltpu


def _triplet_ce_kernel(z_a_ref, z_p_ref, z_n_ref, s_ref, l_ref, out_ref,
                       *, margin, batch, block_rows, tiles_per_core):
    p = pl.program_id(0)   # core-split axis ("parallel")
    t = pl.program_id(1)   # batch-reduction axis ("arbitrary")

    # Zero this core's resident accumulator block at the start of its reduction.
    @pl.when(t == 0)
    def _init():
        out_ref[...] = jnp.zeros_like(out_ref)

    # Global (un-clamped) tile index; only used for masking so padded /
    # replayed remainder tiles contribute nothing to either sum.
    tile_idx = p * tiles_per_core + t
    row0 = tile_idx * block_rows

    za = z_a_ref[...].astype(jnp.float32)
    zp = z_p_ref[...].astype(jnp.float32)
    zn = z_n_ref[...].astype(jnp.float32)
    tb = za.shape[0]

    rows = jax.lax.broadcasted_iota(jnp.int32, (tb, 1), 0) + row0
    valid = rows < batch                                          # [tb, 1]

    # ---- Triplet margin loss: relu(|a-p| - |a-n| + margin) -----------------
    d_ap = jnp.sqrt(jnp.sum((za - zp) ** 2, axis=-1, keepdims=True))   # [tb,1]
    d_an = jnp.sqrt(jnp.sum((za - zn) ** 2, axis=-1, keepdims=True))   # [tb,1]
    hinge = jnp.maximum(d_ap - d_an + margin, 0.0)
    hinge_sum = jnp.sum(jnp.where(valid, hinge, 0.0))

    # ---- Cross entropy with class-index targets: lse(s) - s[label] ---------
    s = s_ref[...].astype(jnp.float32)                            # [tb, C]
    labels = l_ref[...]                                           # [tb, 1] i32
    c = s.shape[-1]
    col = jax.lax.broadcasted_iota(jnp.int32, (tb, c), 1)
    mx = jnp.max(s, axis=-1, keepdims=True)                       # [tb, 1]
    sh = s - mx                                                   # reused twice
    sumexp = jnp.sum(jnp.exp(sh), axis=-1, keepdims=True)         # [tb, 1]
    picked = jnp.sum(jnp.where(col == labels, sh, 0.0), axis=-1, keepdims=True)
    ce_term = jnp.log(sumexp) - picked                            # [tb, 1]
    ce_sum = jnp.sum(jnp.where(valid, ce_term, 0.0))

    # Accumulate the two partial sums into lanes 0 / 1 of this core's
    # lane-dense (8, 128) output block.
    lane = jax.lax.broadcasted_iota(jnp.int32, (8, 128), 1)
    upd = (jnp.where(lane == 0, hinge_sum, 0.0)
           + jnp.where(lane == 1, ce_sum, 0.0))
    out_ref[...] += upd


def _round_up(x, m):
    return ((x + m - 1) // m) * m


def _pick_block_rows(B, D, C, z_bytes, s_bytes):
    # Keep double-buffered input blocks under ~8 MiB so they fit comfortably
    # within every generation's scoped-VMEM default (v5e 16 MiB, v6e/v7x 32 MiB).
    per_row = 3 * D * z_bytes + C * s_bytes + 4   # 3 embeddings + logits + label
    budget = 8 * 1024 * 1024
    tb = budget // (2 * max(per_row, 1))
    tb = min(int(tb), 2048, _round_up(B, 8))
    return max(8, (tb // 8) * 8)


def triplet_margin_ce_loss(z_a, z_p, z_n, s_a, l_a, margin=1.0, block_rows=None):
    """Returns (triplet_margin_loss, cross_entropy_loss) as float32 scalars."""
    B, D = z_a.shape
    C = s_a.shape[-1]
    labels2d = l_a.reshape(B, 1).astype(jnp.int32)

    if block_rows is None:
        tb = _pick_block_rows(B, D, C,
                              jnp.dtype(z_a.dtype).itemsize,
                              jnp.dtype(s_a.dtype).itemsize)
    else:
        tb = max(8, (min(int(block_rows), _round_up(B, 8)) // 8) * 8)

    num_tiles = pl.cdiv(B, tb)
    num_cores = 2 if num_tiles >= 2 else 1     # v7x megacore split; 1-way otherwise
    tiles_per_core = pl.cdiv(num_tiles, num_cores)

    def row_map(p, t):
        # Clamp so the DMA never addresses a fully out-of-range tile; masking
        # inside the kernel (via the un-clamped index) keeps the sums correct.
        return (jnp.minimum(p * tiles_per_core + t, num_tiles - 1), 0)

    kernel = functools.partial(
        _triplet_ce_kernel,
        margin=float(margin), batch=B,
        block_rows=tb, tiles_per_core=tiles_per_core)

    out = pl.pallas_call(
        kernel,
        out_shape=jax.ShapeDtypeStruct((num_cores * 8, 128), jnp.float32),
        grid=(num_cores, tiles_per_core),
        in_specs=[
            pl.BlockSpec((tb, D), row_map),   # z_a
            pl.BlockSpec((tb, D), row_map),   # z_p
            pl.BlockSpec((tb, D), row_map),   # z_n
            pl.BlockSpec((tb, C), row_map),   # s_a
            pl.BlockSpec((tb, 1), row_map),   # labels
        ],
        # Per-core output block stays resident across the reduction axis.
        out_specs=pl.BlockSpec((8, 128), lambda p, t: (p, 0)),
        compiler_params=pltpu.CompilerParams(
            dimension_semantics=("parallel", "arbitrary")),
    )(z_a, z_p, z_n, s_a, labels2d)

    partials = out.reshape(num_cores, 8, 128)[:, 0, :2]   # [num_cores, 2]
    totals = jnp.sum(partials, axis=0)
    inv_b = jnp.float32(1.0 / B)
    return totals[0] * inv_b, totals[1] * inv_b


def _reference(z_a, z_p, z_n, s_a, l_a, margin=1.0):
    d1 = jnp.linalg.norm(z_a - z_p, axis=-1)
    d2 = jnp.linalg.norm(z_a - z_n, axis=-1)
    tml = jnp.mean(jnp.maximum(d1 - d2 + margin, 0.0))
    logp = jax.nn.log_softmax(s_a, axis=-1)
    ce = -jnp.mean(jnp.take_along_axis(logp, l_a[:, None], axis=-1))
    return tml, ce


if __name__ == "__main__":
    key = jax.random.PRNGKey(0)
    k1, k2, k3, k4, k5 = jax.random.split(key, 5)

    # Batch deliberately NOT a multiple of the tile to exercise remainder
    # masking, multi-tile accumulation and the 2-way core-split axis.
    B, D, C = 20, 32, 16
    z_a = jax.random.normal(k1, (B, D), dtype=jnp.float32)
    z_p = jax.random.normal(k2, (B, D), dtype=jnp.float32)
    z_n = jax.random.normal(k3, (B, D), dtype=jnp.float32)
    s_a = jax.random.normal(k4, (B, C), dtype=jnp.float32)
    l_a = jax.random.randint(k5, (B,), 0, C, dtype=jnp.int32)

    # Small block_rows forces a multi-step grid even at this toy size.
    tml, ce = triplet_margin_ce_loss(z_a, z_p, z_n, s_a, l_a,
                                     margin=1.0, block_rows=8)
    jax.block_until_ready((tml, ce))

    tml_ref, ce_ref = _reference(z_a, z_p, z_n, s_a, l_a, margin=1.0)
    assert jnp.allclose(tml, tml_ref, atol=1e-5, rtol=1e-5), (tml, tml_ref)
    assert jnp.allclose(ce, ce_ref, atol=1e-5, rtol=1e-5), (ce, ce_ref)

    # Also exercise the auto block-size path (single tile, 1 core).
    tml2, ce2 = triplet_margin_ce_loss(z_a, z_p, z_n, s_a, l_a, margin=1.0)
    jax.block_until_ready((tml2, ce2))
    assert jnp.allclose(tml2, tml_ref, atol=1e-5, rtol=1e-5), (tml2, tml_ref)
    assert jnp.allclose(ce2, ce_ref, atol=1e-5, rtol=1e-5), (ce2, ce_ref)

    print("KERNEL_OK")
</pallas_src>

<mosaic_0001>
module attributes {stable_mosaic.version = 11 : i64} {
  func.func @_triplet_ce_kernel(%arg0: i32, %arg1: i32, %arg2: memref<8x32xf32, #tpu.memory_space<vmem>>, %arg3: memref<8x32xf32, #tpu.memory_space<vmem>>, %arg4: memref<8x32xf32, #tpu.memory_space<vmem>>, %arg5: memref<8x16xf32, #tpu.memory_space<vmem>>, %arg6: memref<8x1xi32, #tpu.memory_space<vmem>>, %arg7: memref<8x128xf32, #tpu.memory_space<vmem>>) attributes {dimension_semantics = [#tpu.dimension_semantics<parallel>, #tpu.dimension_semantics<arbitrary>], iteration_bounds = array<i64: 2, 2>, scalar_prefetch = 0 : i64, scratch_operands = 0 : i64, tpu.core_type = #tpu.core_type<tc>, window_params = [{transform_indices = @transform_0, window_bounds = array<i64: 8, 32>}, {transform_indices = @transform_1, window_bounds = array<i64: 8, 32>}, {transform_indices = @transform_2, window_bounds = array<i64: 8, 32>}, {transform_indices = @transform_3, window_bounds = array<i64: 8, 16>}, {transform_indices = @transform_4, window_bounds = array<i64: 8, 1>}, {transform_indices = @transform_5, window_bounds = array<i64: 8, 128>}]} {
    %c0_i32 = arith.constant 0 : i32
    %0 = arith.cmpi eq, %arg1, %c0_i32 : i32
    %1 = arith.extui %0 : i1 to i32
    %c0_i32_0 = arith.constant 0 : i32
    %2 = arith.cmpi ne, %1, %c0_i32_0 : i32
    scf.if %2 {
      %cst_28 = arith.constant 0.000000e+00 : f32
      %74 = vector.broadcast %cst_28 : f32 to vector<8x128xf32>
      %c0_29 = arith.constant 0 : index
      %c0_30 = arith.constant 0 : index
      %75 = vector.load %arg7[%c0_29, %c0_30] : memref<8x128xf32, #tpu.memory_space<vmem>>, vector<8x128xf32>
      tpu.vector_store %arg7[%c0_29, %c0_30], %74 {strides = array<i32>} : memref<8x128xf32, #tpu.memory_space<vmem>>, vector<8x128xf32>,
    } else {
    }
    %c2_i32 = arith.constant 2 : i32
    %3 = arith.muli %arg0, %c2_i32 : i32
    %4 = arith.addi %3, %arg1 : i32
    %c8_i32 = arith.constant 8 : i32
    %5 = arith.muli %4, %c8_i32 : i32
    %c0 = arith.constant 0 : index
    %c0_1 = arith.constant 0 : index
    %6 = vector.load %arg2[%c0, %c0_1] : memref<8x32xf32, #tpu.memory_space<vmem>>, vector<8x32xf32>
    %c0_2 = arith.constant 0 : index
    %c0_3 = arith.constant 0 : index
    %7 = vector.load %arg3[%c0_2, %c0_3] : memref<8x32xf32, #tpu.memory_space<vmem>>, vector<8x32xf32>
    %c0_4 = arith.constant 0 : index
    %c0_5 = arith.constant 0 : index
    %8 = vector.load %arg4[%c0_4, %c0_5] : memref<8x32xf32, #tpu.memory_space<vmem>>, vector<8x32xf32>
    %9 = tpu.iota {dimensions = array<i32: 0>} : vector<8x1xi32>
    %10 = vector.broadcast %5 : i32 to vector<8x1xi32>
    %11 = arith.addi %9, %10 : vector<8x1xi32>
    %c20_i32 = arith.constant 20 : i32
    %12 = vector.broadcast %c20_i32 : i32 to vector<8x1xi32>
    %13 = arith.cmpi slt, %11, %12 : vector<8x1xi32>
    %14 = arith.subf %6, %7 : vector<8x32xf32>
    %15 = arith.mulf %14, %14 : vector<8x32xf32>
    %cst = arith.constant dense<0.000000e+00> : vector<8xf32>
    %16 = vector.multi_reduction <add>, %15, %cst [1] : vector<8x32xf32> to vector<8xf32>
    %17 = vector.shape_cast %16 : vector<8xf32> to vector<8x1xf32>
    %18 = math.sqrt %17 : vector<8x1xf32>
    %19 = arith.subf %6, %8 : vector<8x32xf32>
    %20 = arith.mulf %19, %19 : vector<8x32xf32>
    %cst_6 = arith.constant dense<0.000000e+00> : vector<8xf32>
    %21 = vector.multi_reduction <add>, %20, %cst_6 [1] : vector<8x32xf32> to vector<8xf32>
    %22 = vector.shape_cast %21 : vector<8xf32> to vector<8x1xf32>
    %23 = math.sqrt %22 : vector<8x1xf32>
    %24 = arith.subf %18, %23 : vector<8x1xf32>
    %cst_7 = arith.constant 1.000000e+00 : f32
    %25 = vector.broadcast %cst_7 : f32 to vector<8x1xf32>
    %26 = arith.addf %24, %25 : vector<8x1xf32>
    %cst_8 = arith.constant 0.000000e+00 : f32
    %27 = vector.broadcast %cst_8 : f32 to vector<8x1xf32>
    %28 = arith.maximumf %26, %27 : vector<8x1xf32>
    %cst_9 = arith.constant 0.000000e+00 : f32
    %29 = vector.broadcast %cst_9 : f32 to vector<8x1xf32>
    %30 = arith.select %13, %28, %29 : vector<8x1xi1>, vector<8x1xf32>
    %31 = vector.shape_cast %30 : vector<8x1xf32> to vector<1x8x1xf32>
    %cst_10 = arith.constant dense<0.000000e+00> : vector<1xf32>
    %32 = vector.multi_reduction <add>, %31, %cst_10 [1, 2] : vector<1x8x1xf32> to vector<1xf32>
    %33 = vector.shape_cast %32 : vector<1xf32> to vector<1x1x1xf32>
    %34 = vector.extract %33[0, 0, 0] : f32 from vector<1x1x1xf32>
    %c0_11 = arith.constant 0 : index
    %c0_12 = arith.constant 0 : index
    %35 = vector.load %arg5[%c0_11, %c0_12] : memref<8x16xf32, #tpu.memory_space<vmem>>, vector<8x16xf32>
    %c0_13 = arith.constant 0 : index
    %c0_14 = arith.constant 0 : index
    %36 = vector.load %arg6[%c0_13, %c0_14] : memref<8x1xi32, #tpu.memory_space<vmem>>, vector<8x1xi32>
    %37 = tpu.iota {dimensions = array<i32: 1>} : vector<8x16xi32>
    %cst_15 = arith.constant dense<0xFF800000> : vector<8xf32>
    %38 = vector.multi_reduction <maximumf>, %35, %cst_15 [1] : vector<8x16xf32> to vector<8xf32>
    %39 = vector.shape_cast %38 : vector<8xf32> to vector<8x1xf32>
    %40 = vector.broadcast %39 : vector<8x1xf32> to vector<8x16xf32>
    %41 = arith.subf %35, %40 : vector<8x16xf32>
    %42 = math.exp %41 : vector<8x16xf32>
    %cst_16 = arith.constant dense<0.000000e+00> : vector<8xf32>
    %43 = vector.multi_reduction <add>, %42, %cst_16 [1] : vector<8x16xf32> to vector<8xf32>
    %44 = vector.shape_cast %43 : vector<8xf32> to vector<8x1xf32>
    %45 = vector.broadcast %36 : vector<8x1xi32> to vector<8x16xi32>
    %46 = arith.cmpi eq, %37, %45 : vector<8x16xi32>
    %cst_17 = arith.constant 0.000000e+00 : f32
    %47 = vector.broadcast %cst_17 : f32 to vector<8x16xf32>
    %48 = arith.select %46, %41, %47 : vector<8x16xi1>, vector<8x16xf32>
    %cst_18 = arith.constant dense<0.000000e+00> : vector<8xf32>
    %49 = vector.multi_reduction <add>, %48, %cst_18 [1] : vector<8x16xf32> to vector<8xf32>
    %50 = vector.shape_cast %49 : vector<8xf32> to vector<8x1xf32>
    %51 = math.log %44 : vector<8x1xf32>
    %52 = arith.subf %51, %50 : vector<8x1xf32>
    %cst_19 = arith.constant 0.000000e+00 : f32
    %53 = vector.broadcast %cst_19 : f32 to vector<8x1xf32>
    %54 = arith.select %13, %52, %53 : vector<8x1xi1>, vector<8x1xf32>
    %55 = vector.shape_cast %54 : vector<8x1xf32> to vector<1x8x1xf32>
    %cst_20 = arith.constant dense<0.000000e+00> : vector<1xf32>
    %56 = vector.multi_reduction <add>, %55, %cst_20 [1, 2] : vector<1x8x1xf32> to vector<1xf32>
    %57 = vector.shape_cast %56 : vector<1xf32> to vector<1x1x1xf32>
    %58 = vector.extract %57[0, 0, 0] : f32 from vector<1x1x1xf32>
    %59 = tpu.iota {dimensions = array<i32: 1>} : vector<8x128xi32>
    %c0_i32_21 = arith.constant 0 : i32
    %60 = vector.broadcast %c0_i32_21 : i32 to vector<8x128xi32>
    %61 = arith.cmpi eq, %59, %60 : vector<8x128xi32>
    %cst_22 = arith.constant 0.000000e+00 : f32
    %62 = vector.broadcast %34 : f32 to vector<8x128xf32>
    %63 = vector.broadcast %cst_22 : f32 to vector<8x128xf32>
    %64 = arith.select %61, %62, %63 : vector<8x128xi1>, vector<8x128xf32>
    %c1_i32 = arith.constant 1 : i32
    %65 = vector.broadcast %c1_i32 : i32 to vector<8x128xi32>
    %66 = arith.cmpi eq, %59, %65 : vector<8x128xi32>
    %cst_23 = arith.constant 0.000000e+00 : f32
    %67 = vector.broadcast %58 : f32 to vector<8x128xf32>
    %68 = vector.broadcast %cst_23 : f32 to vector<8x128xf32>
    %69 = arith.select %66, %67, %68 : vector<8x128xi1>, vector<8x128xf32>
    %70 = arith.addf %64, %69 : vector<8x128xf32>
    %c0_24 = arith.constant 0 : index
    %c0_25 = arith.constant 0 : index
    %71 = vector.load %arg7[%c0_24, %c0_25] : memref<8x128xf32, #tpu.memory_space<vmem>>, vector<8x128xf32>
    %72 = arith.addf %71, %70 : vector<8x128xf32>
    %c0_26 = arith.constant 0 : index
    %c0_27 = arith.constant 0 : index
    %73 = vector.load %arg7[%c0_26, %c0_27] : memref<8x128xf32, #tpu.memory_space<vmem>>, vector<8x128xf32>
    tpu.vector_store %arg7[%c0_26, %c0_27], %72 {strides = array<i32>} : memref<8x128xf32, #tpu.memory_space<vmem>>, vector<8x128xf32>,
    return
  }
  func.func @transform_0(%arg0: i32, %arg1: i32) -> (i32, i32) {
    %c2_i32 = arith.constant 2 : i32
    %0 = arith.muli %arg0, %c2_i32 : i32
    %1 = arith.addi %0, %arg1 : i32
    %c2_i32_0 = arith.constant 2 : i32
    %2 = arith.minsi %1, %c2_i32_0 : i32
    %c0_i32 = arith.constant 0 : i32
    %c0_i32_1 = arith.constant 0 : i32
    return %2, %c0_i32 : i32, i32
  }
  func.func @transform_1(%arg0: i32, %arg1: i32) -> (i32, i32) {
    %c2_i32 = arith.constant 2 : i32
    %0 = arith.muli %arg0, %c2_i32 : i32
    %1 = arith.addi %0, %arg1 : i32
    %c2_i32_0 = arith.constant 2 : i32
    %2 = arith.minsi %1, %c2_i32_0 : i32
    %c0_i32 = arith.constant 0 : i32
    %c0_i32_1 = arith.constant 0 : i32
    return %2, %c0_i32 : i32, i32
  }
  func.func @transform_2(%arg0: i32, %arg1: i32) -> (i32, i32) {
    %c2_i32 = arith.constant 2 : i32
    %0 = arith.muli %arg0, %c2_i32 : i32
    %1 = arith.addi %0, %arg1 : i32
    %c2_i32_0 = arith.constant 2 : i32
    %2 = arith.minsi %1, %c2_i32_0 : i32
    %c0_i32 = arith.constant 0 : i32
    %c0_i32_1 = arith.constant 0 : i32
    return %2, %c0_i32 : i32, i32
  }
  func.func @transform_3(%arg0: i32, %arg1: i32) -> (i32, i32) {
    %c2_i32 = arith.constant 2 : i32
    %0 = arith.muli %arg0, %c2_i32 : i32
    %1 = arith.addi %0, %arg1 : i32
    %c2_i32_0 = arith.constant 2 : i32
    %2 = arith.minsi %1, %c2_i32_0 : i32
    %c0_i32 = arith.constant 0 : i32
    %c0_i32_1 = arith.constant 0 : i32
    return %2, %c0_i32 : i32, i32
  }
  func.func @transform_4(%arg0: i32, %arg1: i32) -> (i32, i32) {
    %c2_i32 = arith.constant 2 : i32
    %0 = arith.muli %arg0, %c2_i32 : i32
    %1 = arith.addi %0, %arg1 : i32
    %c2_i32_0 = arith.constant 2 : i32
    %2 = arith.minsi %1, %c2_i32_0 : i32
    %c0_i32 = arith.constant 0 : i32
    %c0_i32_1 = arith.constant 0 : i32
    return %2, %c0_i32 : i32, i32
  }
  func.func @transform_5(%arg0: i32, %arg1: i32) -> (i32, i32) {
    %c0_i32 = arith.constant 0 : i32
    %c0_i32_0 = arith.constant 0 : i32
    return %arg0, %c0_i32 : i32, i32
  }
}

</mosaic_0001>

<llo_original>
// kernel: tpu_custom_call.1
$region0: #{tpu_custom_call.1}
  #allocation0 [shape = 'u32[]', space=smem, size = 0x4, offset = 0x4, fixed_abs, tag = 'smem constant byte address 0x4 - core index']
  #allocation1 [shape = 'u32[144,128]{1,0:T(1,128)}', space=vmem, size = 0x12000, scoped, tag = 'internal scratch']
  %s0 = inlined_call_operand.vmem [shape: f32[20,32], index: 0, kind: input, shape index: {}]
  %s1 = inlined_call_operand.vmem [shape: f32[20,32], index: 1, kind: input, shape index: {}]
  %s2 = inlined_call_operand.vmem [shape: f32[20,32], index: 2, kind: input, shape index: {}]
  %s3 = inlined_call_operand.vmem [shape: f32[20,16], index: 3, kind: input, shape index: {}]
  %s4 = inlined_call_operand.vmem [shape: s32[20,1], index: 4, kind: input, shape index: {}]
  %s5 = inlined_call_operand.hbm [shape: f32[16,128], index: 5, kind: output, shape index: {}]
  %s6 = sld [smem:[#allocation0]]
  $region57: #{tpu_custom_call.1} parent=0
    _
  %s8 = ssub.s32 1, %s6
  %s9 = scalar_select 0, %s8, %s6
  $region1: #{tpu_custom_call.1} parent=0
    #allocation2 [shape = 'u8[8192]{0}', space=vmem, size = 0x2000, scoped, tag = 'output window, operand 0']
    #allocation3 [shape = 's32[2]{0}', space=sflag, size = 0x8, scoped, tag = 'scoped memory for tpu_custom_call.1']
    %10 = vsyncpa [#allocation3], 0
    %s11 = scalar_lea.sflag [#allocation3], 1
    %12 = vsyncpa %s11, 0
    loop: start=0, step=1, limit=6
    $region2: #{tpu_custom_call.1} parent=1 // loop_pre_header
      _
    $region3: #{tpu_custom_call.1} parent=1 // loop_header
      %s14 = sphi 0, %s18
      %p15 = scmp.ge.s32.totalorder %s14, 6
      %s21 = sphi 0, %s33
      %s22 = sphi 0, %s29
      %s23 = sphi 0, %s21
      %s24 = sphi 0, %s22
      %s25 = sphi 0, %s23
      %s26 = sphi 0, %s24
      %s44 = sphi 0, %s46
      %s47 = sphi 0, %s44
      %s48 = sphi 0, %s47
      %s64 = sphi 0, %s48
      %s78 = sphi 0, %s80
      %s81 = sphi 0, %s78
      %s82 = sphi 0, %s81
      %s98 = sphi 0, %s82
      %s112 = sphi 0, %s114
      %s115 = sphi 0, %s112
      %s116 = sphi 0, %s115
      %s132 = sphi 0, %s116
      %s146 = sphi 0, %s148
      %s149 = sphi 0, %s146
      %s150 = sphi 0, %s149
      %s166 = sphi 0, %s150
      %s180 = sphi 0, %s182
      %s183 = sphi 0, %s180
      %s184 = sphi 0, %s183
      %s200 = sphi 0, %s184
      %s206 = sphi 0, %s208
      %s209 = sphi 0, %s206
      %s210 = sphi 0, %s209
      %s226 = sphi 0, %s210
    $region4: #{tpu_custom_call.1} parent=1 // loop_header_branch
      %17 = sbr.rel (%p15) target = $region8
    $region5: #{tpu_custom_call.1} parent=1 // loop_body
      %s19 = ssub.s32 %s14, 1
      %s20 = ssub.s32 %s14, 2
      %s27 = sadd.s32 1, %s22
      %p28 = scmp.ge.s32.totalorder %s27, 2
      %s29 = scalar_select %p28, 0, %s27
      %s30 = sadd.s32 1, %s21
      %s31 = scalar_select %p28, %s30, %s21
      %p32 = scmp.ge.s32.totalorder %s31, 2
      %s33 = scalar_select %p32, 0, %s31
      %s34 = smul.u32 %s21, 2
      %s35 = sadd.s32 %s34, %s22
      %p36 = scmp.lt.s32.totalorder %s35, 2
      %s37 = scalar_select %p36, %s35, 2
      %s38 = smul.u32 %s33, 2
      %s39 = sadd.s32 %s38, %s29
      %p40 = scmp.lt.s32.totalorder %s39, 2
      %s41 = scalar_select %p40, %s39, 2
      %s42 = ssub.s32 %s37, %s41
      %p43 = scmp.eq.s32.totalorder %s42, 0
      %s45 = sadd.s32 %s44, 1
      %s46 = scalar_select %p43, %s44, %s45
      %p49 = pneg %p43
      %p50 = scmp.eq.s32.totalorder %s14, 3
      %p51 = por %p49, %p50
      %p52 = scmp.ne.s32.totalorder %s44, %s47
      %p53 = scmp.eq.s32.totalorder %s14, 0
      %p54 = por %p52, %p53
      %p55 = scmp.ne.s32.totalorder %s44, %s47
      %p56 = scmp.eq.s32.totalorder %s19, 3
      %p57 = por %p55, %p56
      %p58 = scmp.ne.s32.totalorder %s47, %s48
      %p59 = scmp.eq.s32.totalorder %s19, 0
      %p60 = por %p58, %p59
      %p61 = scmp.ne.s32.totalorder %s47, %s48
      %p62 = scmp.eq.s32.totalorder %s20, 3
      %p63 = por %p61, %p62
      %p65 = scmp.ne.s32.totalorder %s48, %s64
      %p66 = scmp.eq.s32.totalorder %s20, 0
      %p67 = por %p65, %p66
      %s68 = smul.u32 %s21, 2
      %s69 = sadd.s32 %s68, %s22
      %p70 = scmp.lt.s32.totalorder %s69, 2
      %s71 = scalar_select %p70, %s69, 2
      %s72 = smul.u32 %s33, 2
      %s73 = sadd.s32 %s72, %s29
      %p74 = scmp.lt.s32.totalorder %s73, 2
      %s75 = scalar_select %p74, %s73, 2
      %s76 = ssub.s32 %s71, %s75
      %p77 = scmp.eq.s32.totalorder %s76, 0
      %s79 = sadd.s32 %s78, 1
      %s80 = scalar_select %p77, %s78, %s79
      %p83 = pneg %p77
      %p84 = scmp.eq.s32.totalorder %s14, 3
      %p85 = por %p83, %p84
      %p86 = scmp.ne.s32.totalorder %s78, %s81
      %p87 = scmp.eq.s32.totalorder %s14, 0
      %p88 = por %p86, %p87
      %p89 = scmp.ne.s32.totalorder %s78, %s81
      %p90 = scmp.eq.s32.totalorder %s19, 3
      %p91 = por %p89, %p90
      %p92 = scmp.ne.s32.totalorder %s81, %s82
      %p93 = scmp.eq.s32.totalorder %s19, 0
      %p94 = por %p92, %p93
      %p95 = scmp.ne.s32.totalorder %s81, %s82
      %p96 = scmp.eq.s32.totalorder %s20, 3
      %p97 = por %p95, %p96
      %p99 = scmp.ne.s32.totalorder %s82, %s98
      %p100 = scmp.eq.s32.totalorder %s20, 0
      %p101 = por %p99, %p100
      %s102 = smul.u32 %s21, 2
      %s103 = sadd.s32 %s102, %s22
      %p104 = scmp.lt.s32.totalorder %s103, 2
      %s105 = scalar_select %p104, %s103, 2
      %s106 = smul.u32 %s33, 2
      %s107 = sadd.s32 %s106, %s29
      %p108 = scmp.lt.s32.totalorder %s107, 2
      %s109 = scalar_select %p108, %s107, 2
      %s110 = ssub.s32 %s105, %s109
      %p111 = scmp.eq.s32.totalorder %s110, 0
      %s113 = sadd.s32 %s112, 1
      %s114 = scalar_select %p111, %s112, %s113
      %p117 = pneg %p111
      %p118 = scmp.eq.s32.totalorder %s14, 3
      %p119 = por %p117, %p118
      %p120 = scmp.ne.s32.totalorder %s112, %s115
      %p121 = scmp.eq.s32.totalorder %s14, 0
      %p122 = por %p120, %p121
      %p123 = scmp.ne.s32.totalorder %s112, %s115
      %p124 = scmp.eq.s32.totalorder %s19, 3
      %p125 = por %p123, %p124
      %p126 = scmp.ne.s32.totalorder %s115, %s116
      %p127 = scmp.eq.s32.totalorder %s19, 0
      %p128 = por %p126, %p127
      %p129 = scmp.ne.s32.totalorder %s115, %s116
      %p130 = scmp.eq.s32.totalorder %s20, 3
      %p131 = por %p129, %p130
      %p133 = scmp.ne.s32.totalorder %s116, %s132
      %p134 = scmp.eq.s32.totalorder %s20, 0
      %p135 = por %p133, %p134
      %s136 = smul.u32 %s21, 2
      %s137 = sadd.s32 %s136, %s22
      %p138 = scmp.lt.s32.totalorder %s137, 2
      %s139 = scalar_select %p138, %s137, 2
      %s140 = smul.u32 %s33, 2
      %s141 = sadd.s32 %s140, %s29
      %p142 = scmp.lt.s32.totalorder %s141, 2
      %s143 = scalar_select %p142, %s141, 2
      %s144 = ssub.s32 %s139, %s143
      %p145 = scmp.eq.s32.totalorder %s144, 0
      %s147 = sadd.s32 %s146, 1
      %s148 = scalar_select %p145, %s146, %s147
      %p151 = pneg %p145
      %p152 = scmp.eq.s32.totalorder %s14, 3
      %p153 = por %p151, %p152
      %p154 = scmp.ne.s32.totalorder %s146, %s149
      %p155 = scmp.eq.s32.totalorder %s14, 0
      %p156 = por %p154, %p155
      %p157 = scmp.ne.s32.totalorder %s146, %s149
      %p158 = scmp.eq.s32.totalorder %s19, 3
      %p159 = por %p157, %p158
      %p160 = scmp.ne.s32.totalorder %s149, %s150
      %p161 = scmp.eq.s32.totalorder %s19, 0
      %p162 = por %p160, %p161
      %p163 = scmp.ne.s32.totalorder %s149, %s150
      %p164 = scmp.eq.s32.totalorder %s20, 3
      %p165 = por %p163, %p164
      %p167 = scmp.ne.s32.totalorder %s150, %s166
      %p168 = scmp.eq.s32.totalorder %s20, 0
      %p169 = por %p167, %p168
      %s170 = smul.u32 %s21, 2
      %s171 = sadd.s32 %s170, %s22
      %p172 = scmp.lt.s32.totalorder %s171, 2
      %s173 = scalar_select %p172, %s171, 2
      %s174 = smul.u32 %s33, 2
      %s175 = sadd.s32 %s174, %s29
      %p176 = scmp.lt.s32.totalorder %s175, 2
      %s177 = scalar_select %p176, %s175, 2
      %s178 = ssub.s32 %s173, %s177
      %p179 = scmp.eq.s32.totalorder %s178, 0
      %s181 = sadd.s32 %s180, 1
      %s182 = scalar_select %p179, %s180, %s181
      %p185 = pneg %p179
      %p186 = scmp.eq.s32.totalorder %s14, 3
      %p187 = por %p185, %p186
      %p188 = scmp.ne.s32.totalorder %s180, %s183
      %p189 = scmp.eq.s32.totalorder %s14, 0
      %p190 = por %p188, %p189
      %p191 = scmp.ne.s32.totalorder %s180, %s183
      %p192 = scmp.eq.s32.totalorder %s19, 3
      %p193 = por %p191, %p192
      %p194 = scmp.ne.s32.totalorder %s183, %s184
      %p195 = scmp.eq.s32.totalorder %s19, 0
      %p196 = por %p194, %p195
      %p197 = scmp.ne.s32.totalorder %s183, %s184
      %p198 = scmp.eq.s32.totalorder %s20, 3
      %p199 = por %p197, %p198
      %p201 = scmp.ne.s32.totalorder %s184, %s200
      %p202 = scmp.eq.s32.totalorder %s20, 0
      %p203 = por %p201, %p202
      %s204 = ssub.s32 %s21, %s33
      %p205 = scmp.eq.s32.totalorder %s204, 0
      %s207 = sadd.s32 %s206, 1
      %s208 = scalar_select %p205, %s206, %s207
      %p211 = pneg %p205
      %p212 = scmp.eq.s32.totalorder %s14, 3
      %p213 = por %p211, %p212
      %p214 = scmp.ne.s32.totalorder %s206, %s209
      %p215 = scmp.eq.s32.totalorder %s14, 0
      %p216 = por %p214, %p215
      %p217 = scmp.ne.s32.totalorder %s206, %s209
      %p218 = scmp.eq.s32.totalorder %s19, 3
      %p219 = por %p217, %p218
      %p220 = scmp.ne.s32.totalorder %s209, %s210
      %p221 = scmp.eq.s32.totalorder %s19, 0
      %p222 = por %p220, %p221
      %p223 = scmp.ne.s32.totalorder %s209, %s210
      %p224 = scmp.eq.s32.totalorder %s20, 3
      %p225 = por %p223, %p224
      %p227 = scmp.ne.s32.totalorder %s210, %s226
      %p228 = scmp.eq.s32.totalorder %s20, 0
      %p229 = por %p227, %p228
      %p230 = scmp.le.s32.totalorder 1, %s14
      %p231 = scmp.lt.s32.totalorder %s14, 5
      %p232 = pnand %p230, %p231
      %p233 = pneg %p232
      // Predicated region
      $region9: #{tpu_custom_call.1} parent=5 // pred_check
        _
      $region10: #{tpu_custom_call.1} parent=5 // pred_check_branch
        %235 = sbr.rel (%p232) target = $region12
      $region11: #{tpu_custom_call.1} parent=5 // pred_region
        %s236 = ssub.s32 %s14, 1
      $region12: #{tpu_custom_call.1} parent=5 // pred_fallthru
        _
      %p237 = scmp.lt.s32.totalorder %s14, 4
      // Predicated region
      $region13: #{tpu_custom_call.1} parent=5 // pred_check
        %p238 = pneg %p237
      $region14: #{tpu_custom_call.1} parent=5 // pred_check_branch
        %240 = sbr.rel (%p238) target = $region16
      $region15: #{tpu_custom_call.1} parent=5 // pred_region
        // Predicated region
        $region17: #{tpu_custom_call.1} parent=15 // pred_check
          %p241 = pneg %p54
        $region18: #{tpu_custom_call.1} parent=15 // pred_check_branch
          %243 = sbr.rel (%p241) target = $region20
        $region19: #{tpu_custom_call.1} parent=15 // pred_region
          %s244 = smul.u32 %s21, 2
          %s245 = sadd.s32 %s244, %s22
          %p246 = scmp.lt.s32.totalorder %s245, 2
          %s247 = scalar_select %p246, %s245, 2
          %p248 = scmp.lt.s32.totalorder %s247, 2
          %s249 = scalar_select %p248, %s247, 2
          %s250 = smul.addr %s249, 8
          %s251 = scalar_lea.vmem %s0, %s250
          %s252 = smul.u32 %s21, 2
          %s253 = sadd.s32 %s252, %s22
          %p254 = scmp.lt.s32.totalorder %s253, 2
          %s255 = scalar_select %p254, %s253, 2
        $region20: #{tpu_custom_call.1} parent=15 // pred_fallthru
          _
        // Predicated region
        $region21: #{tpu_custom_call.1} parent=15 // pred_check
          %p256 = pneg %p88
        $region22: #{tpu_custom_call.1} parent=15 // pred_check_branch
          %258 = sbr.rel (%p256) target = $region24
        $region23: #{tpu_custom_call.1} parent=15 // pred_region
          %s259 = smul.u32 %s21, 2
          %s260 = sadd.s32 %s259, %s22
          %p261 = scmp.lt.s32.totalorder %s260, 2
          %s262 = scalar_select %p261, %s260, 2
          %p263 = scmp.lt.s32.totalorder %s262, 2
          %s264 = scalar_select %p263, %s262, 2
          %s265 = smul.addr %s264, 8
          %s266 = scalar_lea.vmem %s1, %s265
          %s267 = smul.u32 %s21, 2
          %s268 = sadd.s32 %s267, %s22
          %p269 = scmp.lt.s32.totalorder %s268, 2
          %s270 = scalar_select %p269, %s268, 2
        $region24: #{tpu_custom_call.1} parent=15 // pred_fallthru
          _
        // Predicated region
        $region25: #{tpu_custom_call.1} parent=15 // pred_check
          %p271 = pneg %p122
        $region26: #{tpu_custom_call.1} parent=15 // pred_check_branch
          %273 = sbr.rel (%p271) target = $region28
        $region27: #{tpu_custom_call.1} parent=15 // pred_region
          %s274 = smul.u32 %s21, 2
          %s275 = sadd.s32 %s274, %s22
          %p276 = scmp.lt.s32.totalorder %s275, 2
          %s277 = scalar_select %p276, %s275, 2
          %p278 = scmp.lt.s32.totalorder %s277, 2
          %s279 = scalar_select %p278, %s277, 2
          %s280 = smul.addr %s279, 8
          %s281 = scalar_lea.vmem %s2, %s280
          %s282 = smul.u32 %s21, 2
          %s283 = sadd.s32 %s282, %s22
          %p284 = scmp.lt.s32.totalorder %s283, 2
          %s285 = scalar_select %p284, %s283, 2
        $region28: #{tpu_custom_call.1} parent=15 // pred_fallthru
          _
        // Predicated region
        $region29: #{tpu_custom_call.1} parent=15 // pred_check
          %p286 = pneg %p156
        $region30: #{tpu_custom_call.1} parent=15 // pred_check_branch
          %288 = sbr.rel (%p286) target = $region32
        $region31: #{tpu_custom_call.1} parent=15 // pred_region
          %s289 = smul.u32 %s21, 2
          %s290 = sadd.s32 %s289, %s22
          %p291 = scmp.lt.s32.totalorder %s290, 2
          %s292 = scalar_select %p291, %s290, 2
          %p293 = scmp.lt.s32.totalorder %s292, 2
          %s294 = scalar_select %p293, %s292, 2
          %s295 = smul.addr %s294, 8
          %s296 = scalar_lea.vmem %s3, %s295
          %s297 = smul.u32 %s21, 2
          %s298 = sadd.s32 %s297, %s22
          %p299 = scmp.lt.s32.totalorder %s298, 2
          %s300 = scalar_select %p299, %s298, 2
        $region32: #{tpu_custom_call.1} parent=15 // pred_fallthru
          _
        // Predicated region
        $region33: #{tpu_custom_call.1} parent=15 // pred_check
          %p301 = pneg %p190
        $region34: #{tpu_custom_call.1} parent=15 // pred_check_branch
          %303 = sbr.rel (%p301) target = $region36
        $region35: #{tpu_custom_call.1} parent=15 // pred_region
          %s304 = smul.u32 %s21, 2
          %s305 = sadd.s32 %s304, %s22
          %p306 = scmp.lt.s32.totalorder %s305, 2
          %s307 = scalar_select %p306, %s305, 2
          %p308 = scmp.lt.s32.totalorder %s307, 2
          %s309 = scalar_select %p308, %s307, 2
          %s310 = smul.addr %s309, 8
          %s311 = scalar_lea.vmem %s4, %s310
          %s312 = smul.u32 %s21, 2
          %s313 = sadd.s32 %s312, %s22
          %p314 = scmp.lt.s32.totalorder %s313, 2
          %s315 = scalar_select %p314, %s313, 2
        $region36: #{tpu_custom_call.1} parent=15 // pred_fallthru
          _
      $region16: #{tpu_custom_call.1} parent=5 // pred_fallthru
        _
      %p316 = scmp.le.s32.totalorder 1, %s14
      %p317 = scmp.lt.s32.totalorder %s14, 5
      %p318 = pnand %p316, %p317
      %p319 = pneg %p318
      // Predicated region
      $region37: #{tpu_custom_call.1} parent=5 // pred_check
        _
      $region38: #{tpu_custom_call.1} parent=5 // pred_check_branch
        %321 = sbr.rel (%p318) target = $region40
      $region39: #{tpu_custom_call.1} parent=5 // pred_region
        %s322 = ssub.s32 %s14, 1
        %s323 = smul.u32 %s23, 2
        %s324 = sadd.s32 %s323, %s24
        %p325 = scmp.lt.s32.totalorder %s324, 2
        %s326 = scalar_select %p325, %s324, 2
        %p327 = scmp.lt.s32.totalorder %s326, 2
        %s328 = scalar_select %p327, %s326, 2
        %s329 = smul.addr %s328, 8
        %s330 = scalar_lea.vmem %s0, %s329
        %p331 = pneg %p60
        %p332 = pneg %p57
        %s333 = smul.u32 %s23, 2
        %s334 = sadd.s32 %s333, %s24
        %p335 = scmp.lt.s32.totalorder %s334, 2
        %s336 = scalar_select %p335, %s334, 2
        %p337 = scmp.lt.s32.totalorder %s336, 2
        %s338 = scalar_select %p337, %s336, 2
        %s339 = smul.addr %s338, 8
        %s340 = scalar_lea.vmem %s1, %s339
        %p341 = pneg %p94
        %p342 = pneg %p91
        %s343 = smul.u32 %s23, 2
        %s344 = sadd.s32 %s343, %s24
        %p345 = scmp.lt.s32.totalorder %s344, 2
        %s346 = scalar_select %p345, %s344, 2
        %p347 = scmp.lt.s32.totalorder %s346, 2
        %s348 = scalar_select %p347, %s346, 2
        %s349 = smul.addr %s348, 8
        %s350 = scalar_lea.vmem %s2, %s349
        %p351 = pneg %p128
        %p352 = pneg %p125
        %s353 = smul.u32 %s23, 2
        %s354 = sadd.s32 %s353, %s24
        %p355 = scmp.lt.s32.totalorder %s354, 2
        %s356 = scalar_select %p355, %s354, 2
        %p357 = scmp.lt.s32.totalorder %s356, 2
        %s358 = scalar_select %p357, %s356, 2
        %s359 = smul.addr %s358, 8
        %s360 = scalar_lea.vmem %s3, %s359
        %p361 = pneg %p162
        %p362 = pneg %p159
        %s363 = smul.u32 %s23, 2
        %s364 = sadd.s32 %s363, %s24
        %p365 = scmp.lt.s32.totalorder %s364, 2
        %s366 = scalar_select %p365, %s364, 2
        %p367 = scmp.lt.s32.totalorder %s366, 2
        %s368 = scalar_select %p367, %s366, 2
        %s369 = smul.addr %s368, 8
        %s370 = scalar_lea.vmem %s4, %s369
        %p371 = pneg %p196
        %p372 = pneg %p193
        %p373 = pneg %p222
        %p374 = pneg %p219
        %s375 = sand.u32 %s209, 1
        %s376 = scalar_lea.sflag [#allocation3], %s375
        %s377 = sand.u32 %s209, 1
        %s378 = smul.addr %s377, 8
        %s379 = scalar_lea.vmem [#allocation2], %s378
        %s380 = smul.u32 %s23, 2
        %s381 = sadd.s32 %s380, %s24
        %p382 = scmp.lt.s32.totalorder %s381, 2
        %s383 = scalar_select %p382, %s381, 2
        %p384 = scmp.lt.s32.totalorder %s383, 2
        %s385 = scalar_select %p384, %s383, 2
        %s386 = smul.addr %s385, 8
        %s387 = scalar_lea.vmem %s0, %s386
        %s388 = smul.u32 %s23, 2
        %s389 = sadd.s32 %s388, %s24
        %p390 = scmp.lt.s32.totalorder %s389, 2
        %s391 = scalar_select %p390, %s389, 2
        %s392 = smul.u32 %s23, 2
        %s393 = sadd.s32 %s392, %s24
        %p394 = scmp.lt.s32.totalorder %s393, 2
        %s395 = scalar_select %p394, %s393, 2
        %p396 = scmp.lt.s32.totalorder %s395, 2
        %s397 = scalar_select %p396, %s395, 2
        %s398 = smul.addr %s397, 8
        %s399 = scalar_lea.vmem %s1, %s398
        %s400 = smul.u32 %s23, 2
        %s401 = sadd.s32 %s400, %s24
        %p402 = scmp.lt.s32.totalorder %s401, 2
        %s403 = scalar_select %p402, %s401, 2
        %s404 = smul.u32 %s23, 2
        %s405 = sadd.s32 %s404, %s24
        %p406 = scmp.lt.s32.totalorder %s405, 2
        %s407 = scalar_select %p406, %s405, 2
        %p408 = scmp.lt.s32.totalorder %s407, 2
        %s409 = scalar_select %p408, %s407, 2
        %s410 = smul.addr %s409, 8
        %s411 = scalar_lea.vmem %s2, %s410
        %s412 = smul.u32 %s23, 2
        %s413 = sadd.s32 %s412, %s24
        %p414 = scmp.lt.s32.totalorder %s413, 2
        %s415 = scalar_select %p414, %s413, 2
        %s416 = smul.u32 %s23, 2
        %s417 = sadd.s32 %s416, %s24
        %p418 = scmp.lt.s32.totalorder %s417, 2
        %s419 = scalar_select %p418, %s417, 2
        %p420 = scmp.lt.s32.totalorder %s419, 2
        %s421 = scalar_select %p420, %s419, 2
        %s422 = smul.addr %s421, 8
        %s423 = scalar_lea.vmem %s3, %s422
        %s424 = smul.u32 %s23, 2
        %s425 = sadd.s32 %s424, %s24
        %p426 = scmp.lt.s32.totalorder %s425, 2
        %s427 = scalar_select %p426, %s425, 2
        %s428 = smul.u32 %s23, 2
        %s429 = sadd.s32 %s428, %s24
        %p430 = scmp.lt.s32.totalorder %s429, 2
        %s431 = scalar_select %p430, %s429, 2
        %p432 = scmp.lt.s32.totalorder %s431, 2
        %s433 = scalar_select %p432, %s431, 2
        %s434 = smul.addr %s433, 8
        %s435 = scalar_lea.vmem %s4, %s434
        %s436 = smul.u32 %s23, 2
        %s437 = sadd.s32 %s436, %s24
        %p438 = scmp.lt.s32.totalorder %s437, 2
        %s439 = scalar_select %p438, %s437, 2
        %p440 = scmp.eq.s32.totalorder %s24, 0
        // Predicated region
        $region41: #{tpu_custom_call.1} parent=39 // pred_check
          %p441 = pneg %p440
        $region42: #{tpu_custom_call.1} parent=39 // pred_check_branch
          %443 = sbr.rel (%p441) target = $region44
        $region43: #{tpu_custom_call.1} parent=39 // pred_region
          %444 = vst [vmem:[%s379] sm:$0xff] 0.0
        $region44: #{tpu_custom_call.1} parent=39 // pred_fallthru
          _
        %s445 = smul.u32 %s23, 2
        %s446 = sadd.s32 %s445, %s24
        %s447 = smul.u32 %s446, 8
        %v448 = vld [vmem:[%s387] sm:$0xff]
        %v449 = vld [vmem:[%s399] sm:$0xff]
        %v450 = vld [vmem:[%s411] sm:$0xff]
        %v451 = vlaneseq
        %v452 = vshrl.u32 %v451, 7
        %v453 = vstv %s447
        %v454 = vadd.s32 %v452, %v453
        %vm455 = vcmp.lt.s32.totalorder %v454, 20
        %v456 = vsub.f32 %v448, %v449
        %v457 = vmul.f32 %v456, %v456
        %vm458 = vcmask 261120
        %v459 = vsel %vm458, %v457, 0.0
        %460 = vadd.xlane.f32.xlu0 %v459
        %v461 = vpop.xlane.xlu0 %460
        %v462 = vrsqrt.pop %v461
        %v463 = vmul.f32 %v461, %v462
        %vm464 = vcmp.eq.f32.partialorder %v461, inf
        %v465 = vsel %vm464, %v461, %v463
        %vm466 = vcmp.eq.f32.partialorder %v461, 0.0
        %v467 = vand.u32 %v461, 2147483648
        %v468 = vsel %vm466, %v467, %v465
        %v469 = vsub.f32 %v448, %v450
        %v470 = vmul.f32 %v469, %v469
        %v471 = vsel %vm458, %v470, 0.0
        %472 = vadd.xlane.f32.xlu0 %v471
        %v473 = vpop.xlane.xlu0 %472
        %v474 = vrsqrt.pop %v473
        %v475 = vmul.f32 %v473, %v474
        %vm476 = vcmp.eq.f32.partialorder %v473, inf
        %v477 = vsel %vm476, %v473, %v475
        %vm478 = vcmp.eq.f32.partialorder %v473, 0.0
        %v479 = vand.u32 %v473, 2147483648
        %v480 = vsel %vm478, %v479, %v477
        %v481 = vsub.f32 %v468, %v480
        %v482 = vadd.f32 %v481, 1.0
        %v483 = vmax.f32 %v482, 0.0
        %v484 = vsel %vm455, %v483, 0.0
        %vm485 = vcmask 7168
        %v486 = vsel %vm485, %v484, 0.0
        %487 = vadd.xlane.f32.xlu0 %v486
        %v488 = vpop.xlane.xlu0 %487
        %v489 = vrot.slane %v488, 4
        %v490 = vadd.f32 %v488, %v489
        %v491 = vrot.slane %v490, 2
        %v492 = vadd.f32 %v490, %v491
        %v493 = vrot.slane %v492, 1
        %v494 = vadd.f32 %v492, %v493
        %s495 = vtos %v494
        %v496 = vld [vmem:[%s423] sm:$0xff]
        %v497 = vld [vmem:[%s435] sm:$0xff]
        %v498 = vlaneseq
        %v499 = vand.u32 %v498, 127
        %vm500 = vcmask 130048
        %v501 = vsel %vm500, %v496, -inf
        %502 = vmax.xlane.f32.xlu0 %v501
        %v503 = vpop.xlane.xlu0 %502
        %v504 = vsub.f32 %v496, %v503
        %v505 = vmul.f32 %v504, 1.442695
        %v506 = vpow.pop %v505
        %v507 = vsel %vm500, %v506, 0.0
        %508 = vadd.xlane.f32.xlu0 %v507
        %v509 = vpop.xlane.xlu0 %508
        %510 = vset.pattern.permute.xlu0 0
        %511 = vperm.xlu0 %510, %v497
        %v512 = vpop.permute.xlu0 %511
        %vm513 = vcmp.eq.s32.totalorder %v499, %v512
        %v514 = vsel %vm513, %v504, 0.0
        %v515 = vsel %vm500, %v514, 0.0
        %516 = vadd.xlane.f32.xlu0 %v515
        %v517 = vpop.xlane.xlu0 %516
        %v518 = vlog2.pop %v509
        %v519 = vmul.f32 %v518, 0.6931472
        %v520 = vsub.f32 %v519, %v517
        %v521 = vsel %vm455, %v520, 0.0
        %v522 = vsel %vm485, %v521, 0.0
        %523 = vadd.xlane.f32.xlu0 %v522
        %v524 = vpop.xlane.xlu0 %523
        %v525 = vrot.slane %v524, 4
        %v526 = vadd.f32 %v524, %v525
        %v527 = vrot.slane %v526, 2
        %v528 = vadd.f32 %v526, %v527
        %v529 = vrot.slane %v528, 1
        %v530 = vadd.f32 %v528, %v529
        %s531 = vtos %v530
        %vm532 = vcmp.eq.s32.totalorder %v499, 0
        %v533 = vstv %s495
        %v534 = vsel %vm532, %v533, 0.0
        %vm535 = vcmp.eq.s32.totalorder %v499, 1
        %v536 = vstv %s531
        %v537 = vsel %vm535, %v536, 0.0
        %v538 = vadd.f32 %v534, %v537
        %v539 = vld [vmem:[%s379] sm:$0xff]
        %v540 = vadd.f32 %v539, %v538
        %541 = vst [vmem:[%s379] sm:$0xff] %v540
        %s542 = sand.u32 %s209, 1
        %s543 = scalar_lea.sflag [#allocation3], %s542
        %s544 = sand.u32 %s209, 1
        %s545 = smul.addr %s544, 8
        %s546 = scalar_lea.vmem [#allocation2], %s545
        // Predicated region
        $region45: #{tpu_custom_call.1} parent=39 // pred_check
          %p547 = pneg %p219
        $region46: #{tpu_custom_call.1} parent=39 // pred_check_branch
          %549 = sbr.rel (%p547) target = $region48
        $region47: #{tpu_custom_call.1} parent=39 // pred_region
          %s551 = ssub.s32 128, 128
          %552 = vsyncadd %s543, %s551
          %s553 = smul.addr %s23, 128
          %s554 = scalar_lea.hbm %s5, %s553
          %s556 = sshll.u32 %s546, 4
          %s557 = int_to_ptr.vmem [resolvable:$true] %s556
          %559 = dma.vmem_to_hbm [thread:$0]  %s557, 128, %s554, %s543
        $region48: #{tpu_custom_call.1} parent=39 // pred_fallthru
          _
      $region40: #{tpu_custom_call.1} parent=5 // pred_fallthru
        _
      %p560 = scmp.le.s32.totalorder 2, %s14
      // Predicated region
      $region49: #{tpu_custom_call.1} parent=5 // pred_check
        %p561 = pneg %p560
      $region50: #{tpu_custom_call.1} parent=5 // pred_check_branch
        %563 = sbr.rel (%p561) target = $region52
      $region51: #{tpu_custom_call.1} parent=5 // pred_region
        %s564 = ssub.s32 %s14, 2
        // Predicated region
        $region53: #{tpu_custom_call.1} parent=51 // pred_check
          %p565 = pneg %p225
        $region54: #{tpu_custom_call.1} parent=51 // pred_check_branch
          %567 = sbr.rel (%p565) target = $region56
        $region55: #{tpu_custom_call.1} parent=51 // pred_region
          %s568 = sand.u32 %s210, 1
          %s569 = scalar_lea.sflag [#allocation3], %s568
          %s570 = sand.u32 %s210, 1
          %s571 = smul.addr %s570, 8
          %s572 = scalar_lea.vmem [#allocation2], %s571
          %573 = dma.done %s569, 128
        $region56: #{tpu_custom_call.1} parent=51 // pred_fallthru
          _
      $region52: #{tpu_custom_call.1} parent=5 // pred_fallthru
        _
    $region6: #{tpu_custom_call.1} parent=1 // loop_footer
      %s18 = sadd.s32 1, %s14
    $region7: #{tpu_custom_call.1} parent=1 // loop_footer_branch
      %13 = sbr.rel target = $region3
    $region8: #{tpu_custom_call.1} parent=1 // loop_exit
      _
    %574 = vsyncpa [#allocation3], 1
    %s575 = scalar_lea.sflag [#allocation3], 1
    %576 = vsyncpa %s575, 1

</llo_original>
